<compile_context>
chip_gen: v7x
topology: tpu7x:2x2x1
jax: 0.10.0
libtpu: 0.0.40
codegen_flags: <defaults>
</compile_context>

<pallas_src>
import random

import numpy as np
import jax
import jax.numpy as jnp
from jax.experimental import pallas as pl
from jax.experimental.pallas import tpu as pltpu


# ----------------------------- Pallas kernel --------------------------------

def _mean_agg_kernel(mask_ref, emb_ref, cnt_ref, out_ref):
    """One (i, j, k) grid step of tiled (mask @ embed) / num_neigh.

    CORRECTNESS NOTE: this relies on k (grid axis 2) being the innermost,
    serial ("arbitrary") axis.  out_ref's block index is invariant in k, so
    Pallas keeps the f32 output tile VMEM-resident across the reduction and we
    use it directly as the accumulator.  Reordering the grid or marking k
    "parallel" silently breaks it.
    """
    k = pl.program_id(2)

    @pl.when(k == 0)
    def _init():
        out_ref[...] = jnp.zeros_like(out_ref)

    # MXU: bf16 x bf16 -> f32, accumulated straight into the resident out tile.
    out_ref[...] += jnp.dot(mask_ref[...], emb_ref[...],
                            preferred_element_type=jnp.float32)

    @pl.when(k == pl.num_programs(2) - 1)
    def _finalize():
        # Exact divide; runs once per (tm, tn) tile on a (tm, 1) vector.
        # cnt is precomputed host-side (= len(samp_neigh)); padded rows carry 1.
        out_ref[...] *= 1.0 / jnp.maximum(cnt_ref[...], 1.0)


# ----------------------------- tiling helpers -------------------------------

def _round_up(x, m):
    return ((x + m - 1) // m) * m


def _pick_tiles(B, U, D):
    """Padded sizes + tile sizes.

    Idempotent: feeding the padded sizes back in returns the same tiles, so
    host-side padding (build time) and tile derivation (inside jit, from the
    padded shapes) always agree.
    """
    def pad_and_tile(n, base, target):
        n = _round_up(max(n, base), base)
        if n <= target:
            return n, n          # single tile along this axis -> no re-streaming
        n = _round_up(n, target)
        return n, target

    # bf16 mask packs 16 rows per sublane pair -> B granularity 16.
    # Tile targets sized for v6e's ~675 FLOP/byte ridge; the double-buffered
    # working set (2*(tm*tk + tk*tn)*2B + 2*tm*tn*4B) tops out ~16 MiB.
    B_pad, tm = pad_and_tile(B, 16, 512)
    U_pad, tk = pad_and_tile(U, 128, 2048)
    D_pad, tn = pad_and_tile(D, 128, 1024)

    # v7x has 2 TensorCores sharing HBM; keep >= 2 tiles on a parallel axis
    # when the grid would otherwise collapse to 1x1xK (harmless on v5e/v6e).
    if B_pad == tm and D_pad == tn:
        if tm % 32 == 0:
            tm //= 2            # still a multiple of 16 (bf16 sublane packing)
        elif tn % 256 == 0:
            tn //= 2            # still a multiple of 128 (lane width)
    return B_pad, U_pad, D_pad, tm, tn, tk


# ----------------------------- kernel wrapper -------------------------------

@jax.jit
def mean_aggregate(mask_p, emb_p, cnt_p):
    """mask_p: (B_pad, U_pad) bf16 0/1, emb_p: (U_pad, D_pad) bf16,
    cnt_p: (B_pad, 1) f32 neighbor counts  ->  (B_pad, D_pad) f32 mean feats."""
    B_pad, U_pad = mask_p.shape
    U_pad2, D_pad = emb_p.shape
    assert U_pad == U_pad2 and cnt_p.shape == (B_pad, 1)

    # Re-derive tiles from the (already padded) shapes - idempotent with the
    # padding done at mask/feature build time.
    _, _, _, tm, tn, tk = _pick_tiles(B_pad, U_pad, D_pad)
    grid = (B_pad // tm, D_pad // tn, U_pad // tk)
    gi, gj, gk = grid

    # Double-buffered working-set estimate; set the scoped-VMEM limit
    # explicitly (cap at 48 MiB so we never crowd v7x's 64 MiB physical VMEM).
    tile_bytes = 2 * (tm * tk * 2 + tk * tn * 2 + tm * tn * 4 + tm * 4)
    vmem_limit = int(min(max(2 * tile_bytes, 32 * 1024 * 1024),
                         48 * 1024 * 1024))

    cost = pl.CostEstimate(
        flops=2 * B_pad * U_pad * D_pad,
        transcendentals=0,
        # Include grid re-read factors: mask is streamed gj times, embed gi times.
        bytes_accessed=(gj * B_pad * U_pad * 2 + gi * U_pad * D_pad * 2
                        + B_pad * D_pad * 4 + gj * B_pad * 4),
    )

    return pl.pallas_call(
        _mean_agg_kernel,
        out_shape=jax.ShapeDtypeStruct((B_pad, D_pad), jnp.float32),
        grid_spec=pltpu.PrefetchScalarGridSpec(
            num_scalar_prefetch=0,
            grid=grid,
            in_specs=[
                pl.BlockSpec((tm, tk), lambda i, j, k: (i, k)),   # mask tile
                pl.BlockSpec((tk, tn), lambda i, j, k: (k, j)),   # embed tile
                pl.BlockSpec((tm, 1), lambda i, j, k: (i, 0)),    # neighbor count
            ],
            out_specs=pl.BlockSpec((tm, tn), lambda i, j, k: (i, j)),
        ),
        compiler_params=pltpu.CompilerParams(
            # k MUST stay the last, "arbitrary" axis (see kernel docstring).
            dimension_semantics=("parallel", "parallel", "arbitrary"),
            vmem_limit_bytes=vmem_limit,
        ),
        cost_estimate=cost,
    )(mask_p, emb_p, cnt_p)


# ------------------------- host-side graph glue -----------------------------

def prepare_features(feat_table):
    """One-time setup: pad the feature table's column dim to D_pad and cast to
    bf16 host-side, so every per-forward gather already yields padded bf16."""
    feat_table = np.asarray(feat_table, dtype=np.float32)
    N, D = feat_table.shape
    _, _, D_pad, _, _, _ = _pick_tiles(16, 128, D)   # D_pad depends only on D
    ft_p = np.zeros((N, D_pad), dtype=np.float32)
    ft_p[:, :D] = feat_table
    return jnp.asarray(ft_p.astype(jnp.bfloat16)), D


def build_mask_and_unique(nodes, to_neighs, feat_dim, num_sample=10, gcn=False):
    """Mirrors the PyTorch module's Python glue, but emits the mask already
    padded to the kernel grid and bf16 (built host-side in numpy), plus the
    exact per-row neighbor counts, so no pad/cast XLA passes are needed."""
    if num_sample:
        samp_neighs = [
            set(random.sample(sorted(to_neigh), num_sample))
            if len(to_neigh) >= num_sample else set(to_neigh)
            for to_neigh in to_neighs
        ]
    else:
        samp_neighs = [set(n) for n in to_neighs]
    if gcn:
        samp_neighs = [s | {nodes[i]} for i, s in enumerate(samp_neighs)]

    unique_nodes_list = sorted(set.union(*samp_neighs))
    unique_nodes = {n: i for i, n in enumerate(unique_nodes_list)}

    B, U = len(samp_neighs), len(unique_nodes_list)
    B_pad, U_pad, _, _, _, _ = _pick_tiles(B, U, feat_dim)

    mask = np.zeros((B_pad, U_pad), dtype=np.float32)
    cnt = np.ones((B_pad, 1), dtype=np.float32)      # padded rows divide by 1
    for i, samp_neigh in enumerate(samp_neighs):
        for n in samp_neigh:
            mask[i, unique_nodes[n]] = 1.0
        cnt[i, 0] = max(len(samp_neigh), 1)

    idx = np.zeros((U_pad,), dtype=np.int32)          # pad gathers with node 0
    idx[:U] = np.asarray(unique_nodes_list, dtype=np.int32)   # (masked-out rows)

    mask_bf16 = jnp.asarray(mask.astype(jnp.bfloat16))        # host-side cast
    return mask_bf16, jnp.asarray(cnt), jnp.asarray(idx), B, unique_nodes_list


def mean_aggregator_forward(feat_p, feat_dim, nodes, to_neighs,
                            num_sample=10, gcn=False):
    """Full forward: sampling/mask glue + gather + Pallas mean aggregation."""
    mask_p, cnt_p, idx_p, B, _ = build_mask_and_unique(
        nodes, to_neighs, feat_dim, num_sample=num_sample, gcn=gcn)
    emb_p = jnp.take(feat_p, idx_p, axis=0)           # (U_pad, D_pad) bf16
    out_p = mean_aggregate(mask_p, emb_p, cnt_p)
    return out_p[:B, :feat_dim]


# ----------------------------- test helpers ---------------------------------

def _pad_dense(mask_np, emb_np):
    """Host-side padding/casting for dense test inputs (mirrors build_mask_*)."""
    mask_np = np.asarray(mask_np, dtype=np.float32)
    emb_np = np.asarray(emb_np, dtype=np.float32)
    B, U = mask_np.shape
    U2, D = emb_np.shape
    assert U == U2
    B_pad, U_pad, D_pad, _, _, _ = _pick_tiles(B, U, D)
    m = np.zeros((B_pad, U_pad), np.float32); m[:B, :U] = mask_np
    e = np.zeros((U_pad, D_pad), np.float32); e[:U, :D] = emb_np
    cnt = np.maximum(m.sum(axis=1, keepdims=True), 1.0).astype(np.float32)
    return (jnp.asarray(m.astype(jnp.bfloat16)),
            jnp.asarray(e.astype(jnp.bfloat16)),
            jnp.asarray(cnt), B, D)


def _reference(mask_f32, emb_f32):
    """Same math as the PyTorch forward, on bf16-rounded embeddings."""
    emb = jnp.asarray(emb_f32).astype(jnp.bfloat16).astype(jnp.float32)
    mask = jnp.asarray(mask_f32)
    num_neigh = jnp.maximum(mask.sum(axis=1, keepdims=True), 1.0)
    return (mask / num_neigh) @ emb


# --------------------------------- main --------------------------------------

if __name__ == "__main__":
    random.seed(0)
    key = jax.random.PRNGKey(0)

    # ---- small shapes consistent with the module's forward ----
    num_nodes_total = 64   # total graph nodes
    feat_dim = 32          # feature dimension
    batch = 8              # nodes in the batch
    num_sample = 10

    k_feat, k_mask = jax.random.split(key)
    feat_table = jax.random.normal(k_feat, (num_nodes_total, feat_dim),
                                   dtype=jnp.float32)
    feat_p, D = prepare_features(feat_table)   # padded + bf16 once at setup

    nodes = list(range(batch))
    to_neighs = []
    for i in range(batch):
        deg = 5 + (i * 3) % 12
        neighs = {(i * 7 + 3 * j + 1) % num_nodes_total for j in range(deg)}
        neighs.discard(i)
        to_neighs.append(neighs)

    # TODO(synk): the original gcn branch does `set + set` (a PyTorch-side bug);
    # here gcn=True uses set union instead.
    mask_p, cnt_p, idx_p, B, uniq = build_mask_and_unique(
        nodes, to_neighs, feat_dim, num_sample=num_sample, gcn=False)
    emb_p = jnp.take(feat_p, idx_p, axis=0)
    to_feats = jax.block_until_ready(mean_aggregate(mask_p, emb_p, cnt_p))
    to_feats = to_feats[:B, :feat_dim]

    U = len(uniq)
    mask_f32 = np.asarray(mask_p[:B, :U], dtype=np.float32)        # 0/1 exact
    emb_f32 = np.asarray(feat_table)[np.asarray(uniq, np.int32)]   # true gather
    ref = _reference(mask_f32, emb_f32)
    assert to_feats.shape == (batch, feat_dim)
    assert jnp.allclose(to_feats, ref, atol=1e-2, rtol=1e-2), (
        float(jnp.max(jnp.abs(to_feats - ref))))

    # ---- second check: exercises the multi-tile (i, k) accumulator path ----
    B2, U2, D2 = 24, 2200, 384     # -> grid (2, 1, 2) after padding/tiling
    km, ke = jax.random.split(k_mask)
    mask2 = np.asarray((jax.random.uniform(km, (B2, U2)) < 0.01)
                       .astype(jnp.float32))
    emb2 = np.asarray(jax.random.normal(ke, (U2, D2), dtype=jnp.float32))
    m_p, e_p, c_p, B2_, D2_ = _pad_dense(mask2, emb2)
    out2 = jax.block_until_ready(mean_aggregate(m_p, e_p, c_p))[:B2_, :D2_]
    ref2 = _reference(mask2, emb2)
    assert out2.shape == (B2, D2)
    assert jnp.allclose(out2, ref2, atol=1e-2, rtol=1e-2), (
        float(jnp.max(jnp.abs(out2 - ref2))))

    print("KERNEL_OK")
</pallas_src>

<mosaic_0001>
module attributes {stable_mosaic.version = 11 : i64} {
  func.func @_mean_agg_kernel(%arg0: i32, %arg1: i32, %arg2: i32, %arg3: memref<16x128xbf16, #tpu.memory_space<vmem>>, %arg4: memref<128x128xbf16, #tpu.memory_space<vmem>>, %arg5: memref<16x1xf32, #tpu.memory_space<vmem>>, %arg6: memref<16x128xf32, #tpu.memory_space<vmem>>) attributes {dimension_semantics = [#tpu.dimension_semantics<parallel>, #tpu.dimension_semantics<parallel>, #tpu.dimension_semantics<arbitrary>], iteration_bounds = array<i64: 1, 1, 1>, scalar_prefetch = 0 : i64, scratch_operands = 0 : i64, tpu.core_type = #tpu.core_type<tc>, window_params = [{transform_indices = @transform_0, window_bounds = array<i64: 16, 128>}, {transform_indices = @transform_1, window_bounds = array<i64: 128, 128>}, {transform_indices = @transform_2, window_bounds = array<i64: 16, 1>}, {transform_indices = @transform_3, window_bounds = array<i64: 16, 128>}]} {
    %c0_i32 = arith.constant 0 : i32
    %0 = arith.cmpi eq, %arg2, %c0_i32 : i32
    %1 = arith.extui %0 : i1 to i32
    %c0_i32_0 = arith.constant 0 : i32
    %2 = arith.cmpi ne, %1, %c0_i32_0 : i32
    scf.if %2 {
      %cst_10 = arith.constant 0.000000e+00 : f32
      %12 = vector.broadcast %cst_10 : f32 to vector<16x128xf32>
      %c0_11 = arith.constant 0 : index
      %c0_12 = arith.constant 0 : index
      %13 = vector.load %arg6[%c0_11, %c0_12] : memref<16x128xf32, #tpu.memory_space<vmem>>, vector<16x128xf32>
      tpu.vector_store %arg6[%c0_11, %c0_12], %12 {strides = array<i32>} : memref<16x128xf32, #tpu.memory_space<vmem>>, vector<16x128xf32>,
    } else {
    }
    %c0 = arith.constant 0 : index
    %c0_1 = arith.constant 0 : index
    %3 = vector.load %arg6[%c0, %c0_1] : memref<16x128xf32, #tpu.memory_space<vmem>>, vector<16x128xf32>
    %c0_2 = arith.constant 0 : index
    %c0_3 = arith.constant 0 : index
    %4 = vector.load %arg3[%c0_2, %c0_3] : memref<16x128xbf16, #tpu.memory_space<vmem>>, vector<16x128xbf16>
    %c0_4 = arith.constant 0 : index
    %c0_5 = arith.constant 0 : index
    %5 = vector.load %arg4[%c0_4, %c0_5] : memref<128x128xbf16, #tpu.memory_space<vmem>>, vector<128x128xbf16>
    %cst = arith.constant dense<0.000000e+00> : vector<16x128xf32>
    %6 = tpu.matmul %4, %5, %cst {dimension_numbers = #tpu.dot_dimension_numbers<[1], [0], [0], [1], [0, 0, 1, 1], [], []>} : vector<16x128xbf16>, vector<128x128xbf16>, vector<16x128xf32> -> vector<16x128xf32>
    %7 = arith.addf %3, %6 : vector<16x128xf32>
    %c0_6 = arith.constant 0 : index
    %c0_7 = arith.constant 0 : index
    %8 = vector.load %arg6[%c0_6, %c0_7] : memref<16x128xf32, #tpu.memory_space<vmem>>, vector<16x128xf32>
    tpu.vector_store %arg6[%c0_6, %c0_7], %7 {strides = array<i32>} : memref<16x128xf32, #tpu.memory_space<vmem>>, vector<16x128xf32>,
    %c0_i32_8 = arith.constant 0 : i32
    %9 = arith.cmpi eq, %arg2, %c0_i32_8 : i32
    %10 = arith.extui %9 : i1 to i32
    %c0_i32_9 = arith.constant 0 : i32
    %11 = arith.cmpi ne, %10, %c0_i32_9 : i32
    scf.if %11 {
      %c0_10 = arith.constant 0 : index
      %c0_11 = arith.constant 0 : index
      %12 = vector.load %arg6[%c0_10, %c0_11] : memref<16x128xf32, #tpu.memory_space<vmem>>, vector<16x128xf32>
      %c0_12 = arith.constant 0 : index
      %c0_13 = arith.constant 0 : index
      %13 = vector.load %arg5[%c0_12, %c0_13] : memref<16x1xf32, #tpu.memory_space<vmem>>, vector<16x1xf32>
      %cst_14 = arith.constant 1.000000e+00 : f32
      %14 = vector.broadcast %cst_14 : f32 to vector<16x1xf32>
      %15 = arith.maximumf %13, %14 : vector<16x1xf32>
      %cst_15 = arith.constant 1.000000e+00 : f32
      %16 = vector.broadcast %cst_15 : f32 to vector<16x1xf32>
      %17 = arith.divf %16, %15 : vector<16x1xf32>
      %18 = vector.broadcast %17 : vector<16x1xf32> to vector<16x128xf32>
      %19 = arith.mulf %12, %18 : vector<16x128xf32>
      %c0_16 = arith.constant 0 : index
      %c0_17 = arith.constant 0 : index
      %20 = vector.load %arg6[%c0_16, %c0_17] : memref<16x128xf32, #tpu.memory_space<vmem>>, vector<16x128xf32>
      tpu.vector_store %arg6[%c0_16, %c0_17], %19 {strides = array<i32>} : memref<16x128xf32, #tpu.memory_space<vmem>>, vector<16x128xf32>,
    } else {
    }
    return
  }
  func.func @transform_0(%arg0: i32, %arg1: i32, %arg2: i32) -> (i32, i32) {
    %c0_i32 = arith.constant 0 : i32
    return %arg0, %arg2 : i32, i32
  }
  func.func @transform_1(%arg0: i32, %arg1: i32, %arg2: i32) -> (i32, i32) {
    %c0_i32 = arith.constant 0 : i32
    return %arg2, %arg1 : i32, i32
  }
  func.func @transform_2(%arg0: i32, %arg1: i32, %arg2: i32) -> (i32, i32) {
    %c0_i32 = arith.constant 0 : i32
    %c0_i32_0 = arith.constant 0 : i32
    return %arg0, %c0_i32 : i32, i32
  }
  func.func @transform_3(%arg0: i32, %arg1: i32, %arg2: i32) -> (i32, i32) {
    %c0_i32 = arith.constant 0 : i32
    return %arg0, %arg1 : i32, i32
  }
}

</mosaic_0001>

<llo_original>
// kernel: mean_aggregate.1
$region0: #{mean_aggregate.1}
  #allocation0 [shape = 'u32[]', space=smem, size = 0x4, offset = 0x4, fixed_abs, tag = 'smem constant byte address 0x4 - core index']
  #allocation1 [shape = 'u32[144,128]{1,0:T(1,128)}', space=vmem, size = 0x12000, scoped, tag = 'internal scratch']
  %s0 = inlined_call_operand.vmem [shape: bf16[16,128], index: 0, kind: input, shape index: {}]
  %s1 = inlined_call_operand.hbm [shape: bf16[128,128], index: 1, kind: input, shape index: {}]
  %s2 = inlined_call_operand.vmem [shape: f32[16,1], index: 2, kind: input, shape index: {}]
  %s3 = inlined_call_operand.hbm [shape: f32[16,128], index: 3, kind: output, shape index: {}]
  %s4 = sld [smem:[#allocation0]]
  $region34: #{mean_aggregate.1} parent=0
    _
  %s6 = ssub.s32 1, %s4
  %s7 = scalar_select 0, %s6, %s4
  $region1: #{mean_aggregate.1} parent=0
    #allocation2 [shape = 'u8[32768]{0}', space=vmem, size = 0x8000, scoped, tag = 'input window, operand 1, single buffered']
    #allocation3 [shape = 's32[1]{0}', space=sflag, size = 0x4, scoped, tag = 'scoped memory for mean_aggregate.1']
    #allocation4 [shape = 's32[1]{0}', space=sflag, size = 0x4, scoped, tag = 'scoped memory for mean_aggregate.1']
    #allocation5 [shape = 'u8[8192]{0}', space=vmem, size = 0x2000, scoped, tag = 'output window, operand 0, single buffered']
    %8 = vsyncpa [#allocation3], 0
    %9 = vsyncpa [#allocation4], 0
    // Predicated region
    $region2: #{mean_aggregate.1} parent=1 // pred_check
      _
    $region3: #{mean_aggregate.1} parent=1 // pred_check_branch
      %11 = sbr.rel (0) target = $region5
    $region4: #{mean_aggregate.1} parent=1 // pred_region
      _
    $region5: #{mean_aggregate.1} parent=1 // pred_fallthru
      _
    // Predicated region
    $region6: #{mean_aggregate.1} parent=1 // pred_check
      _
    $region7: #{mean_aggregate.1} parent=1 // pred_check_branch
      %13 = sbr.rel (0) target = $region9
    $region8: #{mean_aggregate.1} parent=1 // pred_region
      %s15 = ssub.s32 1024, 1024
      %16 = vsyncadd [#allocation3], %s15
      %s17 = sshll.u32 [#allocation2], 4
      %s18 = int_to_ptr.vmem [resolvable:$true] %s17
      %23 = dma.hbm_to_vmem [thread:$0]  %s1, 1024, %s18, [#allocation3], 64, 64, 4
    $region9: #{mean_aggregate.1} parent=1 // pred_fallthru
      _
    // Predicated region
    $region10: #{mean_aggregate.1} parent=1 // pred_check
      _
    $region11: #{mean_aggregate.1} parent=1 // pred_check_branch
      %25 = sbr.rel (0) target = $region13
    $region12: #{mean_aggregate.1} parent=1 // pred_region
      _
    $region13: #{mean_aggregate.1} parent=1 // pred_fallthru
      _
    // Predicated region
    $region14: #{mean_aggregate.1} parent=1 // pred_check
      _
    $region15: #{mean_aggregate.1} parent=1 // pred_check_branch
      %27 = sbr.rel (0) target = $region17
    $region16: #{mean_aggregate.1} parent=1 // pred_region
      %28 = dma.done [#allocation3], 1024
    $region17: #{mean_aggregate.1} parent=1 // pred_fallthru
      _
    %p30 = scmp.eq.s32.totalorder 0, 0
    // Predicated region
    $region18: #{mean_aggregate.1} parent=1 // pred_check
      %p31 = pneg %p30
    $region19: #{mean_aggregate.1} parent=1 // pred_check_branch
      %33 = sbr.rel (%p31) target = $region21
    $region20: #{mean_aggregate.1} parent=1 // pred_region
      %34 = vst [vmem:[#allocation5] sm:$0xff] 0.0
      %35 = vst [vmem:[#allocation5 + $0x8] sm:$0xff] 0.0
    $region21: #{mean_aggregate.1} parent=1 // pred_fallthru
      _
    %v36 = vld [vmem:[#allocation5] sm:$0xff]
    %v37 = vld [vmem:[#allocation5 + $0x8] sm:$0xff]
    %v38 = vld [vmem:[%s0] sm:$0xf]
    %v39 = vld [vmem:[%s0 + $0x4] sm:$0xf]
    %v40 = vld [vmem:[#allocation2] sm:$0xf]
    %v41 = vld [vmem:[#allocation2 + $0x4] sm:$0xf]
    %v42 = vld [vmem:[#allocation2 + $0x8] sm:$0xf]
    %v43 = vld [vmem:[#allocation2 + $0xc] sm:$0xf]
    %v44 = vld [vmem:[#allocation2 + $0x10] sm:$0xf]
    %v45 = vld [vmem:[#allocation2 + $0x14] sm:$0xf]
    %v46 = vld [vmem:[#allocation2 + $0x18] sm:$0xf]
    %v47 = vld [vmem:[#allocation2 + $0x1c] sm:$0xf]
    %v48 = vld [vmem:[#allocation2 + $0x20] sm:$0xf]
    %v49 = vld [vmem:[#allocation2 + $0x24] sm:$0xf]
    %v50 = vld [vmem:[#allocation2 + $0x28] sm:$0xf]
    %v51 = vld [vmem:[#allocation2 + $0x2c] sm:$0xf]
    %v52 = vld [vmem:[#allocation2 + $0x30] sm:$0xf]
    %v53 = vld [vmem:[#allocation2 + $0x34] sm:$0xf]
    %v54 = vld [vmem:[#allocation2 + $0x38] sm:$0xf]
    %v55 = vld [vmem:[#allocation2 + $0x3c] sm:$0xf]
    %v58 = vunpack.c.l.b16 %v38
    %v59 = vunpack.c.l.b16 %v39
    %v60 = vpack.c.b16 %v59, %v58
    %v78 = vunpack.c.l.b16 %v40
    %v79 = vunpack.c.l.b16 %v41
    %v80 = vunpack.c.l.b16 %v42
    %v81 = vunpack.c.l.b16 %v43
    %v82 = vunpack.c.l.b16 %v44
    %v83 = vunpack.c.l.b16 %v45
    %v84 = vunpack.c.l.b16 %v46
    %v85 = vunpack.c.l.b16 %v47
    %v86 = vunpack.c.l.b16 %v48
    %v87 = vunpack.c.l.b16 %v49
    %v88 = vunpack.c.l.b16 %v50
    %v89 = vunpack.c.l.b16 %v51
    %v90 = vunpack.c.l.b16 %v52
    %v91 = vunpack.c.l.b16 %v53
    %v92 = vunpack.c.l.b16 %v54
    %v93 = vunpack.c.l.b16 %v55
    %v94 = vpack.c.b16 %v79, %v78
    %v95 = vpack.c.b16 %v81, %v80
    %v96 = vpack.c.b16 %v83, %v82
    %v97 = vpack.c.b16 %v85, %v84
    %v98 = vpack.c.b16 %v87, %v86
    %v99 = vpack.c.b16 %v89, %v88
    %v100 = vpack.c.b16 %v91, %v90
    %v101 = vpack.c.b16 %v93, %v92
    %110 = vmatprep.subr.bf16.mxu0 0
    %111 = vmatpush1.bf16.msra.mxu0 %v94
    %112 = vmatprep.subr.bf16.mxu0 0
    %113 = vmatpush1.bf16.msra.mxu0 %v95
    %114 = vmatprep.subr.bf16.mxu0 0
    %115 = vmatpush1.bf16.msra.mxu0 %v96
    %116 = vmatprep.subr.bf16.mxu0 0
    %117 = vmatpush1.bf16.msra.mxu0 %v97
    %118 = vmatprep.subr.bf16.mxu0 0
    %119 = vmatpush1.bf16.msra.mxu0 %v98
    %120 = vmatprep.subr.bf16.mxu0 0
    %121 = vmatpush1.bf16.msra.mxu0 %v99
    %122 = vmatprep.subr.bf16.mxu0 0
    %123 = vmatpush1.bf16.msra.mxu0 %v100
    %124 = vmatprep.subr.bf16.mxu0 0
    %125 = vmatpush1.bf16.msra.mxu0 %v101
    %126 = vmatprep.subr.bf16.mxu0 0
    %127 = vmatpush1.bf16.msra.mxu0 0
    %128 = vmatprep.subr.bf16.mxu0 0
    %129 = vmatpush1.bf16.msra.mxu0 0
    %130 = vmatprep.subr.bf16.mxu0 0
    %131 = vmatpush1.bf16.msra.mxu0 0
    %132 = vmatprep.subr.bf16.mxu0 0
    %133 = vmatpush1.bf16.msra.mxu0 0
    %134 = vmatprep.subr.bf16.mxu0 0
    %135 = vmatpush1.bf16.msra.mxu0 0
    %136 = vmatprep.subr.bf16.mxu0 0
    %137 = vmatpush1.bf16.msra.mxu0 0
    %138 = vmatprep.subr.bf16.mxu0 0
    %139 = vmatpush1.bf16.msra.mxu0 0
    %140 = vmatprep.subr.bf16.mxu0 0
    %141 = vmatpush1.bf16.msra.mxu0 0
    %142 = vmatprep.mubr.bf16.mxu0 0
    %143 = vmatmul.mubr.bf16.gmra.mrb[0].mxu0 %v60
    %v144 = vpop.f32.mrb[0].mxu0
    %v145 = vadd.f32 0.0, %v144
    %v146 = vpop.f32.mrb[0].mxu0
    %v147 = vpop.f32.mrb[0].mxu0
    %v148 = vadd.f32 0.0, %v147
    %v149 = vpop.f32.mrb[0].mxu0
    %150 = vdwg.mxu0
    %v151 = vadd.f32 %v36, %v145
    %v152 = vadd.f32 %v37, %v148
    %153 = vst [vmem:[#allocation5] sm:$0xff] %v151
    %154 = vst [vmem:[#allocation5 + $0x8] sm:$0xff] %v152
    // Predicated region
    $region22: #{mean_aggregate.1} parent=1 // pred_check
      %p155 = pneg %p30
    $region23: #{mean_aggregate.1} parent=1 // pred_check_branch
      %157 = sbr.rel (%p155) target = $region25
    $region24: #{mean_aggregate.1} parent=1 // pred_region
      %v158 = vld [vmem:[#allocation5] sm:$0xff]
      %v159 = vld [vmem:[#allocation5 + $0x8] sm:$0xff]
      %v160 = vld [vmem:[%s2] sm:$0xff]
      %v161 = vld [vmem:[%s2 + $0x8] sm:$0xff]
      %v162 = vmax.f32 %v160, 1.0
      %v163 = vmax.f32 %v161, 1.0
      %v164 = vrcp.pop %v162
      %v165 = vmul.f32 1.0, %v164
      %v166 = vrcp.pop %v163
      %v167 = vmul.f32 1.0, %v166
      %169 = vset.pattern.permute.xlu0 0
      %170 = vperm.xlu0 %169, %v165
      %v171 = vpop.permute.xlu0 %170
      %174 = vset.pattern.permute.xlu0 0
      %175 = vperm.xlu0 %174, %v167
      %v176 = vpop.permute.xlu0 %175
      %v178 = vmul.f32 %v158, %v171
      %v179 = vmul.f32 %v159, %v176
      %180 = vst [vmem:[#allocation5] sm:$0xff] %v178
      %181 = vst [vmem:[#allocation5 + $0x8] sm:$0xff] %v179
    $region25: #{mean_aggregate.1} parent=1 // pred_fallthru
      _
    // Predicated region
    $region26: #{mean_aggregate.1} parent=1 // pred_check
      _
    $region27: #{mean_aggregate.1} parent=1 // pred_check_branch
      %183 = sbr.rel (0) target = $region29
    $region28: #{mean_aggregate.1} parent=1 // pred_region
      %s185 = ssub.s32 256, 256
      %186 = vsyncadd [#allocation4], %s185
      %s187 = sshll.u32 [#allocation5], 4
      %s188 = int_to_ptr.vmem [resolvable:$true] %s187
      %193 = dma.vmem_to_hbm [thread:$0]  %s188, 256, %s3, [#allocation4], 128, 128, 8
    $region29: #{mean_aggregate.1} parent=1 // pred_fallthru
      _
    // Predicated region
    $region30: #{mean_aggregate.1} parent=1 // pred_check
      _
    $region31: #{mean_aggregate.1} parent=1 // pred_check_branch
      %195 = sbr.rel (0) target = $region33
    $region32: #{mean_aggregate.1} parent=1 // pred_region
      %196 = dma.done [#allocation4], 256
    $region33: #{mean_aggregate.1} parent=1 // pred_fallthru
      _
    %197 = vsyncpa [#allocation3], 1
    %198 = vsyncpa [#allocation4], 1

</llo_original>
